<compile_context>
chip_gen: v7x
topology: tpu7x:2x2x1
jax: 0.10.0
libtpu: 0.0.40
codegen_flags: <defaults>
</compile_context>

<pallas_src>
import math

import jax
import jax.numpy as jnp
from jax.experimental import pallas as pl
from jax.experimental.pallas import tpu as pltpu


def _sin_time_emb_kernel(t_ref, tbl_ref, o_ref):
    """out = where(cos_mask, cos(t*freq), sin(t*freq)); one lane-dense store.

    t_ref:   (TB, 1)        f32 — one timestep per row of this batch tile.
    tbl_ref: (2, dim_pad)   f32 — row 0: freqs tiled twice (0 in pad lanes);
                                  row 1: 1.0 on the cos half, 0.0 elsewhere.
    o_ref:   (TB, dim_pad)
    """
    t = t_ref[...]                         # (TB, 1)
    freq = tbl_ref[0:1, :]                 # (1, dim_pad) — static slice, no copy
    cos_mask = tbl_ref[1:2, :]             # (1, dim_pad)
    args = t * freq                        # (TB, dim_pad)
    emb = jnp.where(cos_mask > 0.5, jnp.cos(args), jnp.sin(args))
    o_ref[...] = emb.astype(o_ref.dtype)


def sinusoidal_time_embeddings(time_steps: jax.Array, dim: int,
                               *, block_b: int = 512,
                               out_dtype=jnp.float32) -> jax.Array:
    """Equivalent of SinusoidalTimeEmbeddings(dim)(time) for 1-D `time`."""
    assert dim % 2 == 0 and dim >= 4, "dim must be even and >= 4"
    assert block_b % 8 == 0, "batch tile must be a multiple of 8 sublanes"
    half_dim = dim // 2
    b = time_steps.shape[0]
    t2 = time_steps.astype(jnp.float32).reshape(b, 1)

    # Resident constant table, computed once outside the kernel.
    # Lane dim padded to a multiple of 128 so the output store is unmasked.
    dim_pad = ((dim + 127) // 128) * 128
    scale = math.log(10000.0) / (half_dim - 1)
    freqs_half = jnp.exp(jnp.arange(half_dim, dtype=jnp.float32) * -scale)
    freq_full = jnp.zeros((dim_pad,), jnp.float32).at[:dim].set(
        jnp.tile(freqs_half, 2))
    cos_mask = jnp.zeros((dim_pad,), jnp.float32).at[half_dim:dim].set(1.0)
    table = jnp.stack([freq_full, cos_mask], axis=0)           # (2, dim_pad)

    # Batch tile: full array if small; otherwise a multiple-of-8 tile that
    #  (a) keeps the double-buffered output tile within ~8 MiB (fits v5e's
    #      16 MiB scoped-VMEM default and v7x's 64 MiB physical VMEM), and
    #  (b) defaults to 512 rows so large batches give >=2 grid steps for
    #      megacore sharding on v7x (v5e/v6e: extra steps are just pipeline).
    out_bytes = jnp.dtype(out_dtype).itemsize
    vmem_budget = 8 * 1024 * 1024
    max_tb = max(8, (vmem_budget // (2 * dim_pad * out_bytes)) // 8 * 8)
    tile_cap = min(block_b, max_tb)
    tb = b if b <= tile_cap else tile_cap
    grid = (pl.cdiv(b, tb),)

    out = pl.pallas_call(
        _sin_time_emb_kernel,
        out_shape=jax.ShapeDtypeStruct((b, dim_pad), out_dtype),
        grid=grid,
        in_specs=[
            pl.BlockSpec((tb, 1), lambda i: (i, 0)),        # per-tile timesteps
            pl.BlockSpec((2, dim_pad), lambda i: (0, 0)),   # resident freq/mask table
        ],
        out_specs=pl.BlockSpec((tb, dim_pad), lambda i: (i, 0)),
        compiler_params=pltpu.CompilerParams(
            dimension_semantics=("parallel",)),
        cost_estimate=pl.CostEstimate(
            flops=b * dim_pad,
            transcendentals=2 * b * dim_pad,
            bytes_accessed=b * 4 + 2 * dim_pad * 4 + b * dim_pad * out_bytes),
    )(t2, table)

    if dim_pad != dim:
        out = out[:, :dim]
    return out


def _reference(time_steps: jax.Array, dim: int) -> jax.Array:
    # Pure-JAX reference mirroring the PyTorch forward exactly.
    half_dim = dim // 2
    emb = math.log(10000.0) / (half_dim - 1)
    emb = jnp.exp(jnp.arange(half_dim, dtype=jnp.float32) * -emb)
    emb = time_steps.astype(jnp.float32)[:, None] * emb[None, :]
    return jnp.concatenate([jnp.sin(emb), jnp.cos(emb)], axis=-1)


if __name__ == "__main__":
    key = jax.random.PRNGKey(0)

    # Case 1: lane-dense dim (no padding path).
    batch, dim = 8, 128
    time_steps = jax.random.uniform(key, (batch,), dtype=jnp.float32) * 1000.0
    out = jax.block_until_ready(sinusoidal_time_embeddings(time_steps, dim))
    ref = _reference(time_steps, dim)
    assert out.shape == (batch, dim) and out.dtype == jnp.float32
    # Exact sin/cos formulation → essentially bitwise match with the reference.
    assert jnp.allclose(out, ref, atol=1e-6, rtol=1e-6)

    # Case 2: dim not a multiple of 128 (exercises the lane-padding + slice path).
    batch2, dim2 = 2, 96
    time_steps2 = jax.random.uniform(jax.random.PRNGKey(0), (batch2,),
                                     dtype=jnp.float32) * 1000.0
    out2 = jax.block_until_ready(sinusoidal_time_embeddings(time_steps2, dim2))
    ref2 = _reference(time_steps2, dim2)
    assert out2.shape == (batch2, dim2)
    assert jnp.allclose(out2, ref2, atol=1e-6, rtol=1e-6)

    print("KERNEL_OK")
</pallas_src>

<mosaic_0001>
module attributes {stable_mosaic.version = 11 : i64} {
  func.func @_sin_time_emb_kernel(%arg0: i32, %arg1: memref<8x1xf32, #tpu.memory_space<vmem>>, %arg2: memref<2x128xf32, #tpu.memory_space<vmem>>, %arg3: memref<8x128xf32, #tpu.memory_space<vmem>>) attributes {dimension_semantics = [#tpu.dimension_semantics<parallel>], iteration_bounds = array<i64: 1>, scalar_prefetch = 0 : i64, scratch_operands = 0 : i64, tpu.core_type = #tpu.core_type<tc>, window_params = [{transform_indices = @transform_0, window_bounds = array<i64: 8, 1>}, {pipeline_mode = #tpu.pipeline_mode<synchronous>, transform_indices = @transform_1, window_bounds = array<i64: 2, 128>}, {transform_indices = @transform_2, window_bounds = array<i64: 8, 128>}]} {
    %c0 = arith.constant 0 : index
    %c0_0 = arith.constant 0 : index
    %0 = vector.load %arg1[%c0, %c0_0] : memref<8x1xf32, #tpu.memory_space<vmem>>, vector<8x1xf32>
    %c0_1 = arith.constant 0 : index
    %c0_2 = arith.constant 0 : index
    %1 = vector.load %arg2[%c0_1, %c0_2] : memref<2x128xf32, #tpu.memory_space<vmem>>, vector<1x128xf32>
    %c1 = arith.constant 1 : index
    %c0_3 = arith.constant 0 : index
    %2 = vector.load %arg2[%c1, %c0_3] : memref<2x128xf32, #tpu.memory_space<vmem>>, vector<1x128xf32>
    %3 = vector.broadcast %0 : vector<8x1xf32> to vector<8x128xf32>
    %4 = vector.broadcast %1 : vector<1x128xf32> to vector<8x128xf32>
    %5 = arith.mulf %3, %4 : vector<8x128xf32>
    %cst = arith.constant 5.000000e-01 : f32
    %6 = vector.broadcast %cst : f32 to vector<1x128xf32>
    %7 = arith.cmpf ogt, %2, %6 : vector<1x128xf32>
    %8 = math.cos %5 : vector<8x128xf32>
    %9 = math.sin %5 : vector<8x128xf32>
    %10 = vector.shape_cast %7 : vector<1x128xi1> to vector<1x128xi1>
    %11 = vector.broadcast %10 : vector<1x128xi1> to vector<8x128xi1>
    %12 = arith.select %11, %8, %9 : vector<8x128xi1>, vector<8x128xf32>
    %c0_4 = arith.constant 0 : index
    %c0_5 = arith.constant 0 : index
    %13 = vector.load %arg3[%c0_4, %c0_5] : memref<8x128xf32, #tpu.memory_space<vmem>>, vector<8x128xf32>
    tpu.vector_store %arg3[%c0_4, %c0_5], %12 {strides = array<i32>} : memref<8x128xf32, #tpu.memory_space<vmem>>, vector<8x128xf32>,
    return
  }
  func.func @transform_0(%arg0: i32) -> (i32, i32) {
    %c0_i32 = arith.constant 0 : i32
    %c0_i32_0 = arith.constant 0 : i32
    return %arg0, %c0_i32 : i32, i32
  }
  func.func @transform_1(%arg0: i32) -> (i32, i32) {
    %c0_i32 = arith.constant 0 : i32
    %c0_i32_0 = arith.constant 0 : i32
    %c0_i32_1 = arith.constant 0 : i32
    return %c0_i32, %c0_i32_0 : i32, i32
  }
  func.func @transform_2(%arg0: i32) -> (i32, i32) {
    %c0_i32 = arith.constant 0 : i32
    %c0_i32_0 = arith.constant 0 : i32
    return %arg0, %c0_i32 : i32, i32
  }
}

</mosaic_0001>

<llo_original>
// kernel: tpu_custom_call.1
$region0: #{tpu_custom_call.1}
  #allocation0 [shape = 'u32[]', space=smem, size = 0x4, offset = 0x4, fixed_abs, tag = 'smem constant byte address 0x4 - core index']
  #allocation1 [shape = 'u32[144,128]{1,0:T(1,128)}', space=vmem, size = 0x12000, scoped, tag = 'internal scratch']
  %s0 = inlined_call_operand.vmem [shape: f32[8,1], index: 0, kind: input, shape index: {}]
  %s1 = inlined_call_operand.vmem [shape: f32[2,128], index: 1, kind: input, shape index: {}]
  %s2 = inlined_call_operand.hbm [shape: f32[8,128], index: 2, kind: output, shape index: {}]
  %s3 = sld [smem:[#allocation0]]
  $region18: #{tpu_custom_call.1} parent=0
    _
  %s5 = ssub.s32 1, %s3
  %s6 = scalar_select 0, %s5, %s3
  $region1: #{tpu_custom_call.1} parent=0
    #allocation2 [shape = 'u8[4096]{0}', space=vmem, size = 0x1000, scoped, tag = 'output window, operand 0, single buffered']
    #allocation3 [shape = 's32[1]{0}', space=sflag, size = 0x4, scoped, tag = 'scoped memory for tpu_custom_call.1']
    %7 = vsyncpa [#allocation3], 0
    // Predicated region
    $region2: #{tpu_custom_call.1} parent=1 // pred_check
      _
    $region3: #{tpu_custom_call.1} parent=1 // pred_check_branch
      %9 = sbr.rel (0) target = $region5
    $region4: #{tpu_custom_call.1} parent=1 // pred_region
      _
    $region5: #{tpu_custom_call.1} parent=1 // pred_fallthru
      _
    // Predicated region
    $region6: #{tpu_custom_call.1} parent=1 // pred_check
      _
    $region7: #{tpu_custom_call.1} parent=1 // pred_check_branch
      %11 = sbr.rel (0) target = $region9
    $region8: #{tpu_custom_call.1} parent=1 // pred_region
      _
    $region9: #{tpu_custom_call.1} parent=1 // pred_fallthru
      _
    %v12 = vld [vmem:[%s0] sm:$0xff]
    %v13 = vld [vmem:[%s1] sm:$0x1]
    %v14 = vld [vmem:[%s1 + $0x1] sm:$0x1]
    %16 = vset.pattern.permute.xlu0 0
    %17 = vperm.xlu0 %16, %v12
    %v18 = vpop.permute.xlu0 %17
    %v20 = vlaneseq
    %v21 = vshrl.u32 %v20, 7
    %v22 = vsub.s32 0, %v21
    %v23 = vrot.slane %v13, %v22
    %v24 = vmul.f32 %v18, %v23
    %vm25 = vcmp.gt.f32.partialorder %v14, 0.5
    %v26 = vand.u32 2147483647, %v24
    %vm27 = vcmp.le.f32.partialorder %v26, 0.7853982
    %vm28 = vcmp.lt.s32.totalorder %v24, 0
    %v29 = vand.u32 %v24, 2139095040
    %v30 = vshrl.u32 %v29, 23
    %v31 = vsub.s32 %v30, 127
    %v32 = vand.u32 2147483647, %v24
    %v33 = vand.u32 %v32, 8388607
    %v34 = vor.u32 %v33, 8388608
    %v35 = vsub.s32 0, %v34
    %v36 = vadd.s32 %v31, 1
    %vm37 = vcmp.gt.s32.totalorder %v36, 0
    %v38 = vsel %vm37, %v36, 0
    %v39 = vshrl.u32 %v38, 5
    %v40 = vand.u32 %v38, 31
    %v41 = vsub.s32 32, %v40
    %v42 = vshrl.u32 683565275, %v41
    %v43 = vshll.u32 683565275, %v40
    %v44 = vshrl.u32 2475754826, %v41
    %v45 = vor.u32 %v43, %v44
    %v46 = vshll.u32 2475754826, %v40
    %v47 = vshrl.u32 2131351028, %v41
    %v48 = vor.u32 %v46, %v47
    %v49 = vshll.u32 2131351028, %v40
    %v50 = vshrl.u32 2102212464, %v41
    %v51 = vor.u32 %v49, %v50
    %v52 = vshll.u32 2102212464, %v40
    %v53 = vshrl.u32 920167782, %v41
    %v54 = vor.u32 %v52, %v53
    %v55 = vshll.u32 920167782, %v40
    %v56 = vshrl.u32 1326507024, %v41
    %v57 = vor.u32 %v55, %v56
    %vm58 = vcmp.lt.s32.totalorder %v39, 1
    %vm59 = vcmp.lt.s32.totalorder %v39, 2
    %vm60 = vcmp.lt.s32.totalorder %v39, 3
    %vm61 = vcmp.lt.s32.totalorder %v39, 4
    %v62 = vsel %vm58, %v42, %v45
    %v63 = vsel %vm61, %v51, 2102212464
    %v64 = vsel %vm60, %v48, %v63
    %v65 = vsel %vm59, %v62, %v64
    %v66 = vsel %vm58, %v45, %v48
    %v67 = vsel %vm61, %v54, 920167782
    %v68 = vsel %vm60, %v51, %v67
    %v69 = vsel %vm59, %v66, %v68
    %v70 = vsel %vm58, %v48, %v51
    %v71 = vsel %vm61, %v57, 1326507024
    %v72 = vsel %vm60, %v54, %v71
    %v73 = vsel %vm59, %v70, %v72
    %v74 = vshll.u32 %v34, 8
    %v75 = vmul.u32.u64.compose %v74, %v73
    %v76 = vextract.low.u32 %v75
    %v77 = vextract.high.u32 %v75
    %v78 = vmul.u32.u64.compose %v74, %v69
    %v79 = vextract.low.u32 %v78
    %v80 = vextract.high.u32 %v78
    %v81 = vmul.u32 %v74, %v65
    %v82 = vadd.s32 %v77, %v79
    %vm83 = vc.u32 %v77, %v79
    %v84 = vadd.s32 %v80, 1
    %v85 = vsel %vm83, %v84, %v80
    %v86 = vadd.s32 %v81, %v85
    %v87 = vadd.s32 %v86, 536870912
    %v88 = vshrl.u32 %v87, 30
    %v89 = vshll.u32 %v88, 30
    %v90 = vsub.s32 %v86, %v89
    %vm91 = vcmp.lt.s32.totalorder %v90, 0
    %v92 = vsub.s32 0, %v90
    %v93 = vsel %vm91, %v92, %v90
    %v94 = vclz %v93
    %v95 = vsub.s32 %v94, 2
    %vm96 = vcmp.gt.s32.totalorder 0, %v95
    %v97 = vsel %vm96, 0, %v95
    %v98 = vsub.s32 32, %v97
    %v99 = vshll.u32 %v90, %v97
    %v100 = vshrl.u32 %v82, %v98
    %v101 = vor.u32 %v99, %v100
    %v102 = vsub.s32 4294967266, %v97
    %v103 = vadd.s32 %v102, 127
    %v104 = vshll.u32 %v103, 23
    %v105 = vor.u32 4788187, %v104
    %v106 = vand.u32 2147483647, %v105
    %v108 = vcvt.s32.f32 %v101
    %v109 = vmul.f32 %v108, %v106
    %v110 = vxor.u32 %v109, 2147483648
    %v111 = vsel %vm28, %v110, %v109
    %v112 = vsub.s32 4, %v88
    %v113 = vsel %vm28, %v112, %v88
    %v114 = vsel %vm27, %v24, %v111
    %v115 = vsel %vm27, 0, %v113
    %v116 = vcosq.f32.pop %v114
    %v117 = vsinq.f32.pop %v114
    %vm118 = vweird.f32 %v24
    %v119 = vand.u32 %v115, 3
    %vm120 = vcmp.lt.s32.totalorder %v119, 2
    %vm121 = vcmp.eq.s32.totalorder %v119, 0
    %v122 = vxor.u32 %v117, 2147483648
    %v123 = vsel %vm121, %v116, %v122
    %vm124 = vcmp.eq.s32.totalorder %v119, 2
    %v125 = vxor.u32 %v116, 2147483648
    %v126 = vsel %vm124, %v125, %v117
    %v127 = vsel %vm120, %v123, %v126
    %v128 = vsel %vm118, nan, %v127
    %v129 = vand.u32 2147483647, %v24
    %vm130 = vcmp.le.f32.partialorder %v129, 0.7853982
    %vm131 = vcmp.lt.s32.totalorder %v24, 0
    %v132 = vand.u32 %v24, 2139095040
    %v133 = vshrl.u32 %v132, 23
    %v134 = vsub.s32 %v133, 127
    %v135 = vand.u32 2147483647, %v24
    %v136 = vand.u32 %v135, 8388607
    %v137 = vor.u32 %v136, 8388608
    %v138 = vsub.s32 0, %v137
    %v139 = vadd.s32 %v134, 1
    %vm140 = vcmp.gt.s32.totalorder %v139, 0
    %v141 = vsel %vm140, %v139, 0
    %v142 = vshrl.u32 %v141, 5
    %v143 = vand.u32 %v141, 31
    %v144 = vsub.s32 32, %v143
    %v145 = vshrl.u32 683565275, %v144
    %v146 = vshll.u32 683565275, %v143
    %v147 = vshrl.u32 2475754826, %v144
    %v148 = vor.u32 %v146, %v147
    %v149 = vshll.u32 2475754826, %v143
    %v150 = vshrl.u32 2131351028, %v144
    %v151 = vor.u32 %v149, %v150
    %v152 = vshll.u32 2131351028, %v143
    %v153 = vshrl.u32 2102212464, %v144
    %v154 = vor.u32 %v152, %v153
    %v155 = vshll.u32 2102212464, %v143
    %v156 = vshrl.u32 920167782, %v144
    %v157 = vor.u32 %v155, %v156
    %v158 = vshll.u32 920167782, %v143
    %v159 = vshrl.u32 1326507024, %v144
    %v160 = vor.u32 %v158, %v159
    %vm161 = vcmp.lt.s32.totalorder %v142, 1
    %vm162 = vcmp.lt.s32.totalorder %v142, 2
    %vm163 = vcmp.lt.s32.totalorder %v142, 3
    %vm164 = vcmp.lt.s32.totalorder %v142, 4
    %v165 = vsel %vm161, %v145, %v148
    %v166 = vsel %vm164, %v154, 2102212464
    %v167 = vsel %vm163, %v151, %v166
    %v168 = vsel %vm162, %v165, %v167
    %v169 = vsel %vm161, %v148, %v151
    %v170 = vsel %vm164, %v157, 920167782
    %v171 = vsel %vm163, %v154, %v170
    %v172 = vsel %vm162, %v169, %v171
    %v173 = vsel %vm161, %v151, %v154
    %v174 = vsel %vm164, %v160, 1326507024
    %v175 = vsel %vm163, %v157, %v174
    %v176 = vsel %vm162, %v173, %v175
    %v177 = vshll.u32 %v137, 8
    %v178 = vmul.u32.u64.compose %v177, %v176
    %v179 = vextract.low.u32 %v178
    %v180 = vextract.high.u32 %v178
    %v181 = vmul.u32.u64.compose %v177, %v172
    %v182 = vextract.low.u32 %v181
    %v183 = vextract.high.u32 %v181
    %v184 = vmul.u32 %v177, %v168
    %v185 = vadd.s32 %v180, %v182
    %vm186 = vc.u32 %v180, %v182
    %v187 = vadd.s32 %v183, 1
    %v188 = vsel %vm186, %v187, %v183
    %v189 = vadd.s32 %v184, %v188
    %v190 = vadd.s32 %v189, 536870912
    %v191 = vshrl.u32 %v190, 30
    %v192 = vshll.u32 %v191, 30
    %v193 = vsub.s32 %v189, %v192
    %vm194 = vcmp.lt.s32.totalorder %v193, 0
    %v195 = vsub.s32 0, %v193
    %v196 = vsel %vm194, %v195, %v193
    %v197 = vclz %v196
    %v198 = vsub.s32 %v197, 2
    %vm199 = vcmp.gt.s32.totalorder 0, %v198
    %v200 = vsel %vm199, 0, %v198
    %v201 = vsub.s32 32, %v200
    %v202 = vshll.u32 %v193, %v200
    %v203 = vshrl.u32 %v185, %v201
    %v204 = vor.u32 %v202, %v203
    %v205 = vsub.s32 4294967266, %v200
    %v206 = vadd.s32 %v205, 127
    %v207 = vshll.u32 %v206, 23
    %v208 = vor.u32 4788187, %v207
    %v209 = vand.u32 2147483647, %v208
    %v211 = vcvt.s32.f32 %v204
    %v212 = vmul.f32 %v211, %v209
    %v213 = vxor.u32 %v212, 2147483648
    %v214 = vsel %vm131, %v213, %v212
    %v215 = vsub.s32 4, %v191
    %v216 = vsel %vm131, %v215, %v191
    %v217 = vsel %vm130, %v24, %v214
    %v218 = vsel %vm130, 0, %v216
    %v219 = vcosq.f32.pop %v217
    %v220 = vsinq.f32.pop %v217
    %vm221 = vweird.f32 %v24
    %v222 = vadd.s32 %v218, 3
    %v223 = vand.u32 %v222, 3
    %vm224 = vcmp.lt.s32.totalorder %v223, 2
    %vm225 = vcmp.eq.s32.totalorder %v223, 0
    %v226 = vxor.u32 %v220, 2147483648
    %v227 = vsel %vm225, %v219, %v226
    %vm228 = vcmp.eq.s32.totalorder %v223, 2
    %v229 = vxor.u32 %v219, 2147483648
    %v230 = vsel %vm228, %v229, %v220
    %v231 = vsel %vm224, %v227, %v230
    %v232 = vsel %vm221, nan, %v231
    %v233 = vsel %vm25, 1, 0
    %v234 = vlaneseq
    %v235 = vshrl.u32 %v234, 7
    %v236 = vsub.s32 0, %v235
    %v237 = vrot.slane %v233, %v236
    %vm238 = vcmp.eq.s32.totalorder %v237, 1
    %v239 = vsel %vm238, %v128, %v232
    %240 = vst [vmem:[#allocation2] sm:$0xff] %v239
    // Predicated region
    $region10: #{tpu_custom_call.1} parent=1 // pred_check
      _
    $region11: #{tpu_custom_call.1} parent=1 // pred_check_branch
      %242 = sbr.rel (0) target = $region13
    $region12: #{tpu_custom_call.1} parent=1 // pred_region
      %s244 = ssub.s32 128, 128
      %245 = vsyncadd [#allocation3], %s244
      %s247 = sshll.u32 [#allocation2], 4
      %s248 = int_to_ptr.vmem [resolvable:$true] %s247
      %250 = dma.vmem_to_hbm [thread:$0]  %s248, 128, %s2, [#allocation3]
    $region13: #{tpu_custom_call.1} parent=1 // pred_fallthru
      _
    // Predicated region
    $region14: #{tpu_custom_call.1} parent=1 // pred_check
      _
    $region15: #{tpu_custom_call.1} parent=1 // pred_check_branch
      %252 = sbr.rel (0) target = $region17
    $region16: #{tpu_custom_call.1} parent=1 // pred_region
      %253 = dma.done [#allocation3], 128
    $region17: #{tpu_custom_call.1} parent=1 // pred_fallthru
      _
    %254 = vsyncpa [#allocation3], 1

</llo_original>
